<compile_context>
chip_gen: v7x
topology: tpu7x:2x2x1
jax: 0.10.0
libtpu: 0.0.40
codegen_flags: <defaults>
</compile_context>

<pallas_src>
import functools

import jax
import jax.numpy as jnp
from jax.experimental import pallas as pl
from jax.experimental.pallas import tpu as pltpu


_LANES = 128
_BCE_TILE_ROWS = 4096   # (4096,128) f32 block = 2 MiB; 2 inputs x 2 bufs + scratch ~= 10 MiB
_CE_TILE_ROWS = 8192    # (8192,C) block; VMEM lane-padded -> ~4 MiB/buffer; total ~= 20 MiB
_VMEM_LIMIT = 32 * 1024 * 1024


# ----------------------------------------------------------------------------
# Kernels
# ----------------------------------------------------------------------------
def _bce_sum_kernel(x_ref, y_ref, out_ref, acc_ref, *, n_rows, tile_rows, needs_mask):
    """Sum of numerically-stable BCE-with-logits over an (R,128) lane-dense view.

    x_ref, y_ref: (tile_rows, 128) blocks, original dtypes (cast on VPU in-kernel).
    out_ref:      (1, 1) f32, written once on the final step.
    acc_ref:      (tile_rows, 128) f32 VMEM scratch; per-step VPU accumulation only.
    loss = max(x,0) - x*y + log1p(exp(-|x|))
    """
    i = pl.program_id(0)
    last = pl.num_programs(0) - 1

    @pl.when(i == 0)
    def _():
        acc_ref[...] = jnp.zeros_like(acc_ref)

    x = x_ref[...].astype(jnp.float32)
    y = y_ref[...].astype(jnp.float32)
    loss = jnp.maximum(x, 0.0) - x * y + jnp.log1p(jnp.exp(-jnp.abs(x)))

    if needs_mask:
        # Only the final (partial) block can contain garbage rows -> mask only there.
        @pl.when(i != last)
        def _():
            acc_ref[...] += loss

        @pl.when(i == last)
        def _():
            row = jax.lax.broadcasted_iota(jnp.int32, loss.shape, 0)
            acc_ref[...] += jnp.where(i * tile_rows + row < n_rows, loss, 0.0)
    else:
        acc_ref[...] += loss

    @pl.when(i == last)
    def _():
        out_ref[...] = jnp.sum(acc_ref[...], keepdims=True)


def _ce_soft_sum_kernel(x_ref, t_ref, out_ref, acc_ref, *, n_valid, tile_rows, needs_mask):
    """Sum of soft-target cross entropy over (N, C) row tiles (C = full minor dim).

    x_ref, t_ref: (tile_rows, C) blocks, original dtypes.
    out_ref:      (1, 1) f32, written once on the final step.
    acc_ref:      (tile_rows, 1) f32 VMEM scratch (per-row partial losses, VPU adds only).
    loss_j = sum_c t_jc * (logsumexp_c(x_j) - x_jc)
    """
    i = pl.program_id(0)
    last = pl.num_programs(0) - 1

    @pl.when(i == 0)
    def _():
        acc_ref[...] = jnp.zeros_like(acc_ref)

    x = x_ref[...].astype(jnp.float32)                                   # (T, C)
    t = t_ref[...].astype(jnp.float32)
    m = jnp.max(x, axis=-1, keepdims=True)                               # (T, 1)
    lse = m + jnp.log(jnp.sum(jnp.exp(x - m), axis=-1, keepdims=True))   # (T, 1)
    per_row = jnp.sum(t * (lse - x), axis=-1, keepdims=True)             # (T, 1)

    if needs_mask:
        @pl.when(i != last)
        def _():
            acc_ref[...] += per_row

        @pl.when(i == last)
        def _():
            row = jax.lax.broadcasted_iota(jnp.int32, per_row.shape, 0)
            acc_ref[...] += jnp.where(i * tile_rows + row < n_valid, per_row, 0.0)
    else:
        acc_ref[...] += per_row

    @pl.when(i == last)
    def _():
        out_ref[...] = jnp.sum(acc_ref[...], keepdims=True)


# ----------------------------------------------------------------------------
# Wrappers
# ----------------------------------------------------------------------------
@jax.jit
def bce_with_logits_loss(logits, targets):
    """logits, targets: any shape with N total elements; mean BCE-with-logits."""
    x = jnp.reshape(logits, (-1,))
    y = jnp.reshape(targets, (-1,))
    n = x.shape[0]
    r = n // _LANES          # full lane-dense rows handled by the kernel
    n_bulk = r * _LANES

    total = jnp.float32(0.0)
    if r > 0:
        # Offset-0 slice + reshape is a pure re-view of the leading elements; no jnp.pad
        # copy of the whole array.  allow_input_fusion lets XLA fuse it into the operands.
        xb = x[:n_bulk].reshape(r, _LANES)
        yb = y[:n_bulk].reshape(r, _LANES)
        tile_rows = r if r <= _BCE_TILE_ROWS else _BCE_TILE_ROWS
        grid = (pl.cdiv(r, tile_rows),)
        needs_mask = (r % tile_rows) != 0
        kernel = functools.partial(
            _bce_sum_kernel, n_rows=r, tile_rows=tile_rows, needs_mask=needs_mask)
        bytes_accessed = n_bulk * (xb.dtype.itemsize + yb.dtype.itemsize) + 4

        bulk_sum = pl.pallas_call(
            kernel,
            out_shape=jax.ShapeDtypeStruct((1, 1), jnp.float32),
            grid=grid,
            in_specs=[
                pl.BlockSpec((tile_rows, _LANES), lambda i: (i, 0)),
                pl.BlockSpec((tile_rows, _LANES), lambda i: (i, 0)),
            ],
            out_specs=pl.BlockSpec((1, 1), lambda i: (0, 0)),
            scratch_shapes=[pltpu.VMEM((tile_rows, _LANES), jnp.float32)],
            compiler_params=pltpu.CompilerParams(
                dimension_semantics=("arbitrary",),
                vmem_limit_bytes=_VMEM_LIMIT,
                allow_input_fusion=[True, True],
            ),
            cost_estimate=pl.CostEstimate(
                flops=6 * n_bulk, transcendentals=2 * n_bulk,
                bytes_accessed=bytes_accessed),
        )(xb, yb)
        total = total + bulk_sum[0, 0]

    if n_bulk != n:
        # <=127-element tail: negligible work, done with plain jnp ops (no pad copy).
        xt = x[n_bulk:].astype(jnp.float32)
        yt = y[n_bulk:].astype(jnp.float32)
        tail = jnp.maximum(xt, 0.0) - xt * yt + jnp.log1p(jnp.exp(-jnp.abs(xt)))
        total = total + jnp.sum(tail)

    return total / n


@jax.jit
def cross_entropy_soft_loss(logits, targets):
    """logits, targets: (N, C); float (soft-label) targets; mean over N."""
    n, c = logits.shape
    # Block second-to-last dim must be a multiple of 8 or the full dim; last dim is full C.
    tile_rows = n if n <= _CE_TILE_ROWS else _CE_TILE_ROWS
    grid = (pl.cdiv(n, tile_rows),)
    needs_mask = (n % tile_rows) != 0
    kernel = functools.partial(
        _ce_soft_sum_kernel, n_valid=n, tile_rows=tile_rows, needs_mask=needs_mask)
    bytes_accessed = n * c * (logits.dtype.itemsize + targets.dtype.itemsize) + 4

    out = pl.pallas_call(
        kernel,
        out_shape=jax.ShapeDtypeStruct((1, 1), jnp.float32),
        grid=grid,
        in_specs=[
            pl.BlockSpec((tile_rows, c), lambda i: (i, 0)),
            pl.BlockSpec((tile_rows, c), lambda i: (i, 0)),
        ],
        out_specs=pl.BlockSpec((1, 1), lambda i: (0, 0)),
        scratch_shapes=[pltpu.VMEM((tile_rows, 1), jnp.float32)],
        compiler_params=pltpu.CompilerParams(
            dimension_semantics=("arbitrary",),
            vmem_limit_bytes=_VMEM_LIMIT,
        ),
        cost_estimate=pl.CostEstimate(
            flops=6 * n * c, transcendentals=n * (c + 1),
            bytes_accessed=bytes_accessed),
    )(logits, targets)
    return out[0, 0] / n


class RbpClassifierLoss:
    """JAX/Pallas port of the PyTorch RbpClassifierLoss module (forward only)."""

    def __init__(self, num_classes):
        self.num_classes = num_classes

    def __call__(self, input, target):
        x = jnp.squeeze(input, axis=-1)
        if self.num_classes == 2:
            return bce_with_logits_loss(x, target)
        # PyTorch CrossEntropyLoss with float targets == soft-label CE; target must already
        # have the same (N, C) shape as the squeezed logits (module contract).
        return cross_entropy_soft_loss(x, target)


# ----------------------------------------------------------------------------
# Pure-JAX references (for correctness checking only)
# ----------------------------------------------------------------------------
def _bce_ref(x, y):
    x = x.astype(jnp.float32)
    y = y.astype(jnp.float32)
    return jnp.mean(jnp.maximum(x, 0.0) - x * y + jnp.log1p(jnp.exp(-jnp.abs(x))))


def _ce_ref(x, t):
    x = x.astype(jnp.float32)
    t = t.astype(jnp.float32)
    logp = jax.nn.log_softmax(x, axis=-1)
    return jnp.mean(-jnp.sum(t * logp, axis=-1))


if __name__ == "__main__":
    key = jax.random.PRNGKey(0)
    k1, k2, k3, k4, k5, k6 = jax.random.split(key, 6)

    # --- binary (num_classes == 2), N not a multiple of 128 -> kernel bulk + jnp tail ---
    n_bin = 1000
    bin_input = jax.random.normal(k1, (n_bin, 1), dtype=jnp.float32)
    bin_target = jax.random.bernoulli(k2, 0.5, (n_bin,)).astype(jnp.int32)
    bin_loss = RbpClassifierLoss(num_classes=2)(bin_input, bin_target)
    jax.block_until_ready(bin_loss)
    bin_ref = _bce_ref(jnp.squeeze(bin_input, -1), bin_target)
    assert jnp.allclose(bin_loss, bin_ref, atol=1e-5, rtol=1e-5), (bin_loss, bin_ref)

    # --- binary, N a multiple of 128 -> pure kernel path, no tail / no mask ---
    n_al = 256
    al_input = jax.random.normal(k3, (n_al, 1), dtype=jnp.float32)
    al_target = jax.random.bernoulli(k4, 0.5, (n_al,)).astype(jnp.float32)
    al_loss = RbpClassifierLoss(num_classes=2)(al_input, al_target)
    jax.block_until_ready(al_loss)
    al_ref = _bce_ref(jnp.squeeze(al_input, -1), al_target)
    assert jnp.allclose(al_loss, al_ref, atol=1e-5, rtol=1e-5), (al_loss, al_ref)

    # --- multi-class (num_classes == 5): input (N, C, 1), target (N, C) soft labels ---
    n_mc, c_mc = 200, 5
    mc_input = jax.random.normal(k5, (n_mc, c_mc, 1), dtype=jnp.float32)
    mc_classes = jax.random.randint(k6, (n_mc,), 0, c_mc)
    mc_target = jax.nn.one_hot(mc_classes, c_mc, dtype=jnp.float32)
    mc_loss = RbpClassifierLoss(num_classes=c_mc)(mc_input, mc_target)
    jax.block_until_ready(mc_loss)
    mc_ref = _ce_ref(jnp.squeeze(mc_input, -1), mc_target)
    assert jnp.allclose(mc_loss, mc_ref, atol=1e-5, rtol=1e-5), (mc_loss, mc_ref)

    print("KERNEL_OK")
</pallas_src>

<mosaic_0001>
module attributes {stable_mosaic.version = 11 : i64} {
  func.func @_bce_sum_kernel(%arg0: i32, %arg1: memref<7x128xf32, #tpu.memory_space<vmem>>, %arg2: memref<7x128xi32, #tpu.memory_space<vmem>>, %arg3: memref<1x1xf32, #tpu.memory_space<vmem>>, %arg4: memref<7x128xf32, #tpu.memory_space<vmem>>) attributes {dimension_semantics = [#tpu.dimension_semantics<arbitrary>], iteration_bounds = array<i64: 1>, scalar_prefetch = 0 : i64, scratch_operands = 1 : i64, tpu.core_type = #tpu.core_type<tc>, window_params = [{transform_indices = @transform_0, window_bounds = array<i64: 7, 128>}, {transform_indices = @transform_1, window_bounds = array<i64: 7, 128>}, {pipeline_mode = #tpu.pipeline_mode<synchronous>, transform_indices = @transform_2, window_bounds = array<i64: 1, 1>}]} {
    %c0_i32 = arith.constant 0 : i32
    %0 = arith.cmpi eq, %arg0, %c0_i32 : i32
    %1 = arith.extui %0 : i1 to i32
    %c0_i32_0 = arith.constant 0 : i32
    %2 = arith.cmpi ne, %1, %c0_i32_0 : i32
    scf.if %2 {
      %cst_11 = arith.constant 0.000000e+00 : f32
      %22 = vector.broadcast %cst_11 : f32 to vector<7x128xf32>
      %c0_12 = arith.constant 0 : index
      %c0_13 = arith.constant 0 : index
      %23 = vector.load %arg4[%c0_12, %c0_13] : memref<7x128xf32, #tpu.memory_space<vmem>>, vector<7x128xf32>
      tpu.vector_store %arg4[%c0_12, %c0_13], %22 {strides = array<i32>} : memref<7x128xf32, #tpu.memory_space<vmem>>, vector<7x128xf32>,
    } else {
    }
    %c0 = arith.constant 0 : index
    %c0_1 = arith.constant 0 : index
    %3 = vector.load %arg1[%c0, %c0_1] : memref<7x128xf32, #tpu.memory_space<vmem>>, vector<7x128xf32>
    %c0_2 = arith.constant 0 : index
    %c0_3 = arith.constant 0 : index
    %4 = vector.load %arg2[%c0_2, %c0_3] : memref<7x128xi32, #tpu.memory_space<vmem>>, vector<7x128xi32>
    %5 = arith.sitofp %4 : vector<7x128xi32> to vector<7x128xf32>
    %cst = arith.constant 0.000000e+00 : f32
    %6 = vector.broadcast %cst : f32 to vector<7x128xf32>
    %7 = arith.maximumf %3, %6 : vector<7x128xf32>
    %8 = arith.mulf %3, %5 : vector<7x128xf32>
    %9 = arith.subf %7, %8 : vector<7x128xf32>
    %10 = math.absf %3 : vector<7x128xf32>
    %cst_4 = arith.constant 0.000000e+00 : f32
    %11 = vector.broadcast %cst_4 : f32 to vector<7x128xf32>
    %12 = arith.subf %11, %10 : vector<7x128xf32>
    %13 = math.exp %12 : vector<7x128xf32>
    %14 = math.log1p %13 : vector<7x128xf32>
    %15 = arith.addf %9, %14 : vector<7x128xf32>
    %c0_5 = arith.constant 0 : index
    %c0_6 = arith.constant 0 : index
    %16 = vector.load %arg4[%c0_5, %c0_6] : memref<7x128xf32, #tpu.memory_space<vmem>>, vector<7x128xf32>
    %17 = arith.addf %16, %15 : vector<7x128xf32>
    %c0_7 = arith.constant 0 : index
    %c0_8 = arith.constant 0 : index
    %18 = vector.load %arg4[%c0_7, %c0_8] : memref<7x128xf32, #tpu.memory_space<vmem>>, vector<7x128xf32>
    tpu.vector_store %arg4[%c0_7, %c0_8], %17 {strides = array<i32>} : memref<7x128xf32, #tpu.memory_space<vmem>>, vector<7x128xf32>,
    %c0_i32_9 = arith.constant 0 : i32
    %19 = arith.cmpi eq, %arg0, %c0_i32_9 : i32
    %20 = arith.extui %19 : i1 to i32
    %c0_i32_10 = arith.constant 0 : i32
    %21 = arith.cmpi ne, %20, %c0_i32_10 : i32
    scf.if %21 {
      %c0_11 = arith.constant 0 : index
      %c0_12 = arith.constant 0 : index
      %22 = vector.load %arg4[%c0_11, %c0_12] : memref<7x128xf32, #tpu.memory_space<vmem>>, vector<7x128xf32>
      %23 = vector.shape_cast %22 : vector<7x128xf32> to vector<1x7x128xf32>
      %cst_13 = arith.constant dense<0.000000e+00> : vector<1xf32>
      %24 = vector.multi_reduction <add>, %23, %cst_13 [1, 2] : vector<1x7x128xf32> to vector<1xf32>
      %25 = vector.shape_cast %24 : vector<1xf32> to vector<1x1x1xf32>
      %26 = vector.extract %25[0, 0, 0] : f32 from vector<1x1x1xf32>
      %27 = vector.broadcast %26 : f32 to vector<1x1xf32>
      %c0_14 = arith.constant 0 : index
      %c0_15 = arith.constant 0 : index
      %28 = vector.load %arg3[%c0_14, %c0_15] : memref<1x1xf32, #tpu.memory_space<vmem>>, vector<1x1xf32>
      tpu.vector_store %arg3[%c0_14, %c0_15], %27 {strides = array<i32>} : memref<1x1xf32, #tpu.memory_space<vmem>>, vector<1x1xf32>,
    } else {
    }
    return
  }
  func.func @transform_0(%arg0: i32) -> (i32, i32) {
    %c0_i32 = arith.constant 0 : i32
    %c0_i32_0 = arith.constant 0 : i32
    return %arg0, %c0_i32 : i32, i32
  }
  func.func @transform_1(%arg0: i32) -> (i32, i32) {
    %c0_i32 = arith.constant 0 : i32
    %c0_i32_0 = arith.constant 0 : i32
    return %arg0, %c0_i32 : i32, i32
  }
  func.func @transform_2(%arg0: i32) -> (i32, i32) {
    %c0_i32 = arith.constant 0 : i32
    %c0_i32_0 = arith.constant 0 : i32
    %c0_i32_1 = arith.constant 0 : i32
    return %c0_i32, %c0_i32_0 : i32, i32
  }
}

</mosaic_0001>

<llo_original>
// kernel: bce_with_logits_loss.2
$region0: #{bce_with_logits_loss.2}
  #allocation0 [shape = 'u32[]', space=smem, size = 0x4, offset = 0x4, fixed_abs, tag = 'smem constant byte address 0x4 - core index']
  #allocation1 [shape = 'u32[144,128]{1,0:T(1,128)}', space=vmem, size = 0x12000, scoped, tag = 'internal scratch']
  #allocation2 [shape = 'f32[7,128]{1,0:T(8,128)}', space=vmem, size = 0x1000, scoped, tag = 'scratch operand']
  #allocation3 [shape = 'u32[2048]{0}', space=vmem, size = 0x2000, scoped, tag = 'scoped memory for bce_with_logits_loss.2']
  #allocation4 [shape = 'u32[2048]{0}', space=vmem, size = 0x2000, scoped, tag = 'scoped memory for bce_with_logits_loss.2']
  #allocation5 [shape = 'u32[2048]{0}', space=vmem, size = 0x2000, scoped, tag = 'scoped memory for bce_with_logits_loss.2']
  #allocation6 [shape = 'u32[2048]{0}', space=vmem, size = 0x2000, scoped, tag = 'scoped memory for bce_with_logits_loss.2']
  #allocation7 [shape = 'u32[2048]{0}', space=vmem, size = 0x2000, scoped, tag = 'scoped memory for bce_with_logits_loss.2']
  #allocation8 [shape = 'u32[2048]{0}', space=vmem, size = 0x2000, scoped, tag = 'scoped memory for bce_with_logits_loss.2']
  #allocation9 [shape = 'u32[2048]{0}', space=vmem, size = 0x2000, scoped, tag = 'scoped memory for bce_with_logits_loss.2']
  #allocation10 [shape = 'u32[2048]{0}', space=vmem, size = 0x2000, scoped, tag = 'scoped memory for bce_with_logits_loss.2']
  #allocation11 [shape = 'u32[2048]{0}', space=vmem, size = 0x2000, scoped, tag = 'scoped memory for bce_with_logits_loss.2']
  #allocation12 [shape = 'u32[2048]{0}', space=vmem, size = 0x2000, scoped, tag = 'scoped memory for bce_with_logits_loss.2']
  %s0 = inlined_call_operand.hbm [shape: s32[1000], index: 0, kind: input, shape index: {}]
  %s1 = inlined_call_operand.hbm [shape: f32[1000], index: 1, kind: input, shape index: {}]
  %s2 = inlined_call_operand.hbm [shape: f32[1,1], index: 2, kind: output, shape index: {}]
  %s3 = sld [smem:[#allocation0]]
  $region34: #{bce_with_logits_loss.2} parent=0
    _
  %s5 = ssub.s32 1, %s3
  %s6 = scalar_select 0, %s5, %s3
  $region1: #{bce_with_logits_loss.2} parent=0
    #allocation13 [shape = 'u8[4096]{0}', space=vmem, size = 0x1000, scoped, tag = 'operand span for operand 1']
    #allocation14 [shape = 's32[1]{0}', space=sflag, size = 0x4, scoped, tag = 'scoped memory for bce_with_logits_loss.2']
    #allocation15 [shape = 's32[1]{0}', space=sflag, size = 0x4, scoped, tag = 'scoped memory for bce_with_logits_loss.2']
    #allocation16 [shape = 'u8[4096]{0}', space=vmem, size = 0x1000, scoped, tag = 'operand span for operand 0']
    #allocation17 [shape = 's32[1]{0}', space=sflag, size = 0x4, scoped, tag = 'scoped memory for bce_with_logits_loss.2']
    #allocation18 [shape = 'u8[512]{0}', space=vmem, size = 0x400, scoped, tag = 'output window, operand 0, single buffered']
    #allocation19 [shape = 'u8[4096]{0}', space=vmem, size = 0x1000, dematerialized = true, scoped, tag = 'FusionAdapter Buffer %fusion.2 = f32[7,128]{1,0:T(8,128)} fusion(%param_1.4), kind=kLoop, calls=%fused_computation.2.clone, metadata={op_name="jit(bce_with_logits_loss)/reshape" stack_frame_id=10}']
    #allocation20 [shape = 'u8[4096]{0}', space=vmem, size = 0x1000, dematerialized = true, scoped, tag = 'FusionAdapter Buffer %fusion.1 = s32[7,128]{1,0:T(8,128)} fusion(%param_0.8), kind=kLoop, calls=%fused_computation.1.clone, metadata={op_name="jit(bce_with_logits_loss)/reshape" stack_frame_id=11}']
    %7 = vsyncpa [#allocation14], 0
    %8 = vsyncpa [#allocation17], 0
    %9 = vsyncpa [#allocation15], 0
    // Predicated region
    $region2: #{bce_with_logits_loss.2} parent=1 // pred_check
      _
    $region3: #{bce_with_logits_loss.2} parent=1 // pred_check_branch
      %11 = sbr.rel (0) target = $region5
    $region4: #{bce_with_logits_loss.2} parent=1 // pred_region
      %s13 = ssub.s32 128, 128
      %14 = vsyncadd [#allocation14], %s13
      %s16 = sshll.u32 [#allocation13], 4
      %s17 = int_to_ptr.vmem [resolvable:$true] %s16
      %19 = dma.hbm_to_vmem [thread:$0]  %s1, 128, %s17, [#allocation14]
    $region5: #{bce_with_logits_loss.2} parent=1 // pred_fallthru
      _
    // Predicated region
    $region6: #{bce_with_logits_loss.2} parent=1 // pred_check
      _
    $region7: #{bce_with_logits_loss.2} parent=1 // pred_check_branch
      %21 = sbr.rel (0) target = $region9
    $region8: #{bce_with_logits_loss.2} parent=1 // pred_region
      %s23 = ssub.s32 128, 128
      %24 = vsyncadd [#allocation17], %s23
      %s26 = sshll.u32 [#allocation16], 4
      %s27 = int_to_ptr.vmem [resolvable:$true] %s26
      %29 = dma.hbm_to_vmem [thread:$0]  %s0, 128, %s27, [#allocation17]
    $region9: #{bce_with_logits_loss.2} parent=1 // pred_fallthru
      _
    // Predicated region
    $region10: #{bce_with_logits_loss.2} parent=1 // pred_check
      _
    $region11: #{bce_with_logits_loss.2} parent=1 // pred_check_branch
      %31 = sbr.rel (0) target = $region13
    $region12: #{bce_with_logits_loss.2} parent=1 // pred_region
      %32 = dma.done [#allocation14], 128
    $region13: #{bce_with_logits_loss.2} parent=1 // pred_fallthru
      _
    // Predicated region
    $region14: #{bce_with_logits_loss.2} parent=1 // pred_check
      _
    $region15: #{bce_with_logits_loss.2} parent=1 // pred_check_branch
      %34 = sbr.rel (0) target = $region17
    $region16: #{bce_with_logits_loss.2} parent=1 // pred_region
      %35 = dma.done [#allocation17], 128
    $region17: #{bce_with_logits_loss.2} parent=1 // pred_fallthru
      _
    %v36 = vld [vmem:[#allocation13] sm:$0xff]
    %38 = vst [vmem:[#allocation19] sm:$0xff] %v36
    %v39 = vld [vmem:[#allocation16] sm:$0xff]
    %41 = vst [vmem:[#allocation20] sm:$0xff] %v39
    %p42 = scmp.eq.s32.totalorder 0, 0
    // Predicated region
    $region18: #{bce_with_logits_loss.2} parent=1 // pred_check
      %p43 = pneg %p42
    $region19: #{bce_with_logits_loss.2} parent=1 // pred_check_branch
      %45 = sbr.rel (%p43) target = $region21
    $region20: #{bce_with_logits_loss.2} parent=1 // pred_region
      %46 = vst [vmem:[#allocation2] sm:$0x7f] 0.0
    $region21: #{bce_with_logits_loss.2} parent=1 // pred_fallthru
      _
    %v47 = vld [vmem:[#allocation19] sm:$0x7f]
    %v48 = vld [vmem:[#allocation20] sm:$0x7f]
    %v49 = vcvt.s32.f32 %v48
    %v50 = vmax.f32 %v47, 0.0
    %v51 = vmul.f32 %v47, %v49
    %v52 = vsub.f32 %v50, %v51
    %v53 = vand.u32 2147483647, %v47
    %v54 = vsub.f32 0.0, %v53
    %v55 = vmul.f32 %v54, 1.442695
    %v56 = vpow.pop %v55
    %v57 = vadd.f32 %v56, 1.0
    %v58 = vlog2.pop %v57
    %v59 = vmul.f32 %v58, 0.6931472
    %v60 = vmul.f32 -0.5, %v56
    %v61 = vadd.f32 %v60, 1.0
    %v62 = vmul.f32 %v61, %v56
    %v63 = vand.u32 2147483647, %v56
    %vm64 = vcmp.lt.f32.partialorder %v63, 0.0004427343
    %v65 = vsel %vm64, %v62, %v59
    %v66 = vadd.f32 %v52, %v65
    %v67 = vld [vmem:[#allocation2] sm:$0x7f]
    %v68 = vadd.f32 %v67, %v66
    %69 = vst [vmem:[#allocation2] sm:$0x7f] %v68
    // Predicated region
    $region22: #{bce_with_logits_loss.2} parent=1 // pred_check
      %p70 = pneg %p42
    $region23: #{bce_with_logits_loss.2} parent=1 // pred_check_branch
      %72 = sbr.rel (%p70) target = $region25
    $region24: #{bce_with_logits_loss.2} parent=1 // pred_region
      %v73 = vld [vmem:[#allocation2] sm:$0x7f]
      %vm74 = vcmask 1046528
      %v75 = vsel %vm74, %v73, 0.0
      %76 = vadd.xlane.f32.xlu0 %v75
      %v77 = vpop.xlane.xlu0 %76
      %v78 = vrot.slane %v77, 4
      %v79 = vadd.f32 %v77, %v78
      %v80 = vrot.slane %v79, 2
      %v81 = vadd.f32 %v79, %v80
      %v82 = vrot.slane %v81, 1
      %v83 = vadd.f32 %v81, %v82
      %s84 = vtos %v83
      %v85 = vstv %s84
      %vm86 = vcmask 0
      %87 = vst.msk [vmem:[#allocation18] sm:$0x1] %vm86, %v85
    $region25: #{bce_with_logits_loss.2} parent=1 // pred_fallthru
      _
    // Predicated region
    $region26: #{bce_with_logits_loss.2} parent=1 // pred_check
      _
    $region27: #{bce_with_logits_loss.2} parent=1 // pred_check_branch
      %89 = sbr.rel (0) target = $region29
    $region28: #{bce_with_logits_loss.2} parent=1 // pred_region
      %s91 = ssub.s32 16, 16
      %92 = vsyncadd [#allocation15], %s91
      %s94 = sshll.u32 [#allocation18], 4
      %s95 = int_to_ptr.vmem [resolvable:$true] %s94
      %97 = dma.vmem_to_hbm [thread:$0]  %s95, 16, %s2, [#allocation15]
    $region29: #{bce_with_logits_loss.2} parent=1 // pred_fallthru
      _
    // Predicated region
    $region30: #{bce_with_logits_loss.2} parent=1 // pred_check
      _
    $region31: #{bce_with_logits_loss.2} parent=1 // pred_check_branch
      %99 = sbr.rel (0) target = $region33
    $region32: #{bce_with_logits_loss.2} parent=1 // pred_region
      %100 = dma.done [#allocation15], 16
    $region33: #{bce_with_logits_loss.2} parent=1 // pred_fallthru
      _
    %101 = vsyncpa [#allocation14], 1
    %102 = vsyncpa [#allocation17], 1
    %103 = vsyncpa [#allocation15], 1

</llo_original>
